<compile_context>
chip_gen: v7x
topology: tpu7x:2x2x1
jax: 0.10.0
libtpu: 0.0.40
codegen_flags: <defaults>
</compile_context>

<pallas_src>
import jax
import jax.numpy as jnp
from jax.experimental import pallas as pl
from jax.experimental.pallas import tpu as pltpu


def _round_up(x, m):
    return (x + m - 1) // m * m


def _ce_kernel(scores_ref, targets_ref, wrow_ref, out_ref):
    # fp32 upcast before any softmax math -- the module's whole purpose.
    s = scores_ref[...].astype(jnp.float32)                 # (TN, C)
    t = targets_ref[...]                                     # (TN, 1) int32
    w = wrow_ref[...]                                         # (TN, 1) f32 = weight[t]*(t!=ignore)

    # Numerically stable logsumexp over the class (lane) axis.
    m = jnp.max(s, axis=-1, keepdims=True)                    # (TN, 1)
    lse = jnp.log(jnp.sum(jnp.exp(s - m), axis=-1, keepdims=True)) + m

    # Gather s[i, t_i] with a lane-parallel select + XLU reduce.  The full
    # (TN, C) log-prob tensor is never materialized: loss = (lse - s[i,t]) * w.
    cls = jax.lax.broadcasted_iota(jnp.int32, s.shape, 1)     # (TN, C)
    picked_s = jnp.sum(jnp.where(cls == t, s, 0.0), axis=-1, keepdims=True)

    out_ref[...] = (lse - picked_s) * w                        # (TN, 1)


def fp16_safe_cross_entropy(scores, targets, weight=None, ignore_index=-100,
                            tile_n=None, vmem_budget_bytes=16 * 1024 * 1024):
    """Pallas equivalent of FP16SafeCrossEntropy(reduction='none')(scores, targets)."""
    n, c = scores.shape
    targets = targets.astype(jnp.int32)

    # ---- O(N) prep hoisted out of the O(N*C) kernel ----
    if weight is None:
        wt = jnp.ones((n,), jnp.float32)
    else:
        weight = jnp.asarray(weight, jnp.float32)
        wt = weight[jnp.clip(targets, 0, c - 1)]
    wrow = jnp.where(targets != ignore_index, wt, 0.0).astype(jnp.float32)

    # ---- pad the class axis to a lane multiple (128) ----
    c_pad = _round_up(c, 128)
    if c_pad != c:
        neg = jnp.finfo(scores.dtype).min   # exp() underflows to 0, never selected
        scores = jnp.pad(scores, ((0, 0), (0, c_pad - c)), constant_values=neg)

    # ---- choose a row tile that double-buffers comfortably in VMEM ----
    if tile_n is None:
        itemsize = jnp.dtype(scores.dtype).itemsize
        # 2x input tile (double buffer) + ~one fp32 temporary per element
        bytes_per_row = c_pad * (2 * itemsize + 4)
        tn = int(vmem_budget_bytes // bytes_per_row)
        tn = max(8, min(tn, 1024))
        tn = (tn // 8) * 8                       # sublane multiple
        tn = min(tn, _round_up(n, 8))            # don't over-pad tiny batches
        tn = max(tn, 8)
    else:
        tn = int(tile_n)

    # ---- pad rows so the grid divides evenly (padded rows -> loss 0) ----
    n_pad = _round_up(n, tn)
    if n_pad != n:
        scores = jnp.pad(scores, ((0, n_pad - n), (0, 0)))
        targets = jnp.pad(targets, (0, n_pad - n), constant_values=ignore_index)
        wrow = jnp.pad(wrow, (0, n_pad - n))

    targets2d = targets.reshape(n_pad, 1)
    wrow2d = wrow.reshape(n_pad, 1)
    grid = (n_pad // tn,)

    itemsize = jnp.dtype(scores.dtype).itemsize
    cost = pl.CostEstimate(
        flops=6 * n_pad * c_pad,
        transcendentals=n_pad * c_pad,
        bytes_accessed=n_pad * c_pad * itemsize + n_pad * 12,
    )

    out = pl.pallas_call(
        _ce_kernel,
        out_shape=jax.ShapeDtypeStruct((n_pad, 1), jnp.float32),
        grid_spec=pltpu.PrefetchScalarGridSpec(
            num_scalar_prefetch=0,
            grid=grid,
            in_specs=[
                pl.BlockSpec((tn, c_pad), lambda i: (i, 0)),  # logits tile
                pl.BlockSpec((tn, 1), lambda i: (i, 0)),      # targets column
                pl.BlockSpec((tn, 1), lambda i: (i, 0)),      # weight[t]*valid column
            ],
            out_specs=pl.BlockSpec((tn, 1), lambda i: (i, 0)),
        ),
        compiler_params=pltpu.CompilerParams(
            dimension_semantics=("parallel",),
            vmem_limit_bytes=48 * 1024 * 1024,
        ),
        cost_estimate=cost,
    )(scores, targets2d, wrow2d)

    # TODO(synk): add a class-tiled (online-softmax) path for vocabularies too
    # large to fit a single row-tile in VMEM (C >~ 256k), esp. v7x/v5e.
    return out.reshape(n_pad)[:n]


def _reference(scores, targets, weight, ignore_index):
    s = scores.astype(jnp.float32)
    logp = jax.nn.log_softmax(s, axis=1)
    t = targets.astype(jnp.int32)
    safe_t = jnp.clip(t, 0, s.shape[1] - 1)
    picked = jnp.take_along_axis(logp, safe_t[:, None], axis=1)[:, 0]
    w = weight[jnp.clip(t, 0, weight.shape[0] - 1)]
    loss = -picked * w
    return jnp.where(t == ignore_index, 0.0, loss)


if __name__ == "__main__":
    key = jax.random.PRNGKey(0)
    N, C = 8, 32  # batch of 8 examples, 32-class vocab

    k1, k2 = jax.random.split(key)
    # fp16-style low-precision logits (bf16 on TPU); some large values to
    # exercise the fp32-softmax safety.
    scores = (jax.random.normal(k1, (N, C), jnp.float32) * 20.0).astype(jnp.bfloat16)
    targets = jax.random.randint(k2, (N,), 0, C, jnp.int32)
    targets = targets.at[3].set(-100)  # one ignored example

    # Deterministic per-class weights (the optional `weight` buffer).
    weight = 0.5 + jnp.arange(C, dtype=jnp.float32) / C

    loss = fp16_safe_cross_entropy(scores, targets, weight=weight, ignore_index=-100)
    loss = jax.block_until_ready(loss)

    ref = _reference(scores, targets, weight, -100)
    assert loss.shape == (N,) and loss.dtype == jnp.float32
    assert jnp.allclose(loss, ref, rtol=1e-3, atol=1e-3), (loss, ref)
    print("KERNEL_OK")
</pallas_src>

<mosaic_0001>
module attributes {stable_mosaic.version = 11 : i64} {
  func.func @_ce_kernel(%arg0: i32, %arg1: memref<8x128xbf16, #tpu.memory_space<vmem>>, %arg2: memref<8x1xi32, #tpu.memory_space<vmem>>, %arg3: memref<8x1xf32, #tpu.memory_space<vmem>>, %arg4: memref<8x1xf32, #tpu.memory_space<vmem>>) attributes {dimension_semantics = [#tpu.dimension_semantics<parallel>], iteration_bounds = array<i64: 1>, scalar_prefetch = 0 : i64, scratch_operands = 0 : i64, tpu.core_type = #tpu.core_type<tc>, window_params = [{transform_indices = @transform_0, window_bounds = array<i64: 8, 128>}, {transform_indices = @transform_1, window_bounds = array<i64: 8, 1>}, {transform_indices = @transform_2, window_bounds = array<i64: 8, 1>}, {transform_indices = @transform_3, window_bounds = array<i64: 8, 1>}]} {
    %c0 = arith.constant 0 : index
    %c0_0 = arith.constant 0 : index
    %0 = vector.load %arg1[%c0, %c0_0] : memref<8x128xbf16, #tpu.memory_space<vmem>>, vector<8x128xbf16>
    %1 = arith.extf %0 : vector<8x128xbf16> to vector<8x128xf32>
    %c0_1 = arith.constant 0 : index
    %c0_2 = arith.constant 0 : index
    %2 = vector.load %arg2[%c0_1, %c0_2] : memref<8x1xi32, #tpu.memory_space<vmem>>, vector<8x1xi32>
    %c0_3 = arith.constant 0 : index
    %c0_4 = arith.constant 0 : index
    %3 = vector.load %arg3[%c0_3, %c0_4] : memref<8x1xf32, #tpu.memory_space<vmem>>, vector<8x1xf32>
    %cst = arith.constant dense<0xFF800000> : vector<8xf32>
    %4 = vector.multi_reduction <maximumf>, %1, %cst [1] : vector<8x128xf32> to vector<8xf32>
    %5 = vector.shape_cast %4 : vector<8xf32> to vector<8x1xf32>
    %6 = vector.broadcast %5 : vector<8x1xf32> to vector<8x128xf32>
    %7 = arith.subf %1, %6 : vector<8x128xf32>
    %8 = math.exp %7 : vector<8x128xf32>
    %cst_5 = arith.constant dense<0.000000e+00> : vector<8xf32>
    %9 = vector.multi_reduction <add>, %8, %cst_5 [1] : vector<8x128xf32> to vector<8xf32>
    %10 = vector.shape_cast %9 : vector<8xf32> to vector<8x1xf32>
    %11 = math.log %10 : vector<8x1xf32>
    %12 = arith.addf %11, %5 : vector<8x1xf32>
    %13 = tpu.iota {dimensions = array<i32: 1>} : vector<8x128xi32>
    %14 = vector.broadcast %2 : vector<8x1xi32> to vector<8x128xi32>
    %15 = arith.cmpi eq, %13, %14 : vector<8x128xi32>
    %cst_6 = arith.constant 0.000000e+00 : f32
    %16 = vector.broadcast %cst_6 : f32 to vector<8x128xf32>
    %17 = arith.select %15, %1, %16 : vector<8x128xi1>, vector<8x128xf32>
    %cst_7 = arith.constant dense<0.000000e+00> : vector<8xf32>
    %18 = vector.multi_reduction <add>, %17, %cst_7 [1] : vector<8x128xf32> to vector<8xf32>
    %19 = vector.shape_cast %18 : vector<8xf32> to vector<8x1xf32>
    %20 = arith.subf %12, %19 : vector<8x1xf32>
    %21 = arith.mulf %20, %3 : vector<8x1xf32>
    %c0_8 = arith.constant 0 : index
    %c0_9 = arith.constant 0 : index
    %22 = vector.load %arg4[%c0_8, %c0_9] : memref<8x1xf32, #tpu.memory_space<vmem>>, vector<8x1xf32>
    tpu.vector_store %arg4[%c0_8, %c0_9], %21 {strides = array<i32>} : memref<8x1xf32, #tpu.memory_space<vmem>>, vector<8x1xf32>,
    return
  }
  func.func @transform_0(%arg0: i32) -> (i32, i32) {
    %c0_i32 = arith.constant 0 : i32
    %c0_i32_0 = arith.constant 0 : i32
    return %arg0, %c0_i32 : i32, i32
  }
  func.func @transform_1(%arg0: i32) -> (i32, i32) {
    %c0_i32 = arith.constant 0 : i32
    %c0_i32_0 = arith.constant 0 : i32
    return %arg0, %c0_i32 : i32, i32
  }
  func.func @transform_2(%arg0: i32) -> (i32, i32) {
    %c0_i32 = arith.constant 0 : i32
    %c0_i32_0 = arith.constant 0 : i32
    return %arg0, %c0_i32 : i32, i32
  }
  func.func @transform_3(%arg0: i32) -> (i32, i32) {
    %c0_i32 = arith.constant 0 : i32
    %c0_i32_0 = arith.constant 0 : i32
    return %arg0, %c0_i32 : i32, i32
  }
}

</mosaic_0001>

<llo_original>
// kernel: tpu_custom_call.1
$region0: #{tpu_custom_call.1}
  #allocation0 [shape = 'u32[]', space=smem, size = 0x4, offset = 0x4, fixed_abs, tag = 'smem constant byte address 0x4 - core index']
  #allocation1 [shape = 'u32[144,128]{1,0:T(1,128)}', space=vmem, size = 0x12000, scoped, tag = 'internal scratch']
  %s0 = inlined_call_operand.vmem [shape: bf16[8,128], index: 0, kind: input, shape index: {}]
  %s1 = inlined_call_operand.vmem [shape: s32[8,1], index: 1, kind: input, shape index: {}]
  %s2 = inlined_call_operand.vmem [shape: f32[8,1], index: 2, kind: input, shape index: {}]
  %s3 = inlined_call_operand.vmem [shape: f32[8,1], index: 3, kind: output, shape index: {}]
  %s4 = sld [smem:[#allocation0]]
  $region22: #{tpu_custom_call.1} parent=0
    _
  %s6 = ssub.s32 1, %s4
  %s7 = scalar_select 0, %s6, %s4
  // Predicated region
  $region2: #{tpu_custom_call.1} parent=0 // pred_check
    _
  $region3: #{tpu_custom_call.1} parent=0 // pred_check_branch
    %9 = sbr.rel (0) target = $region5
  $region4: #{tpu_custom_call.1} parent=0 // pred_region
    _
  $region5: #{tpu_custom_call.1} parent=0 // pred_fallthru
    _
  // Predicated region
  $region6: #{tpu_custom_call.1} parent=0 // pred_check
    _
  $region7: #{tpu_custom_call.1} parent=0 // pred_check_branch
    %11 = sbr.rel (0) target = $region9
  $region8: #{tpu_custom_call.1} parent=0 // pred_region
    _
  $region9: #{tpu_custom_call.1} parent=0 // pred_fallthru
    _
  // Predicated region
  $region10: #{tpu_custom_call.1} parent=0 // pred_check
    _
  $region11: #{tpu_custom_call.1} parent=0 // pred_check_branch
    %13 = sbr.rel (0) target = $region13
  $region12: #{tpu_custom_call.1} parent=0 // pred_region
    _
  $region13: #{tpu_custom_call.1} parent=0 // pred_fallthru
    _
  %v14 = vld [vmem:[%s0] sm:$0xf]
  %v15 = vunpack.c.l.bf16 %v14
  %v16 = vld [vmem:[%s1] sm:$0xff]
  %v17 = vld [vmem:[%s2] sm:$0xff]
  %18 = vmax.xlane.f32.xlu0 %v15
  %v19 = vpop.xlane.xlu0 %18
  %v20 = vsub.f32 %v15, %v19
  %v21 = vmul.f32 %v20, 1.442695
  %v22 = vpow.pop %v21
  %23 = vadd.xlane.f32.xlu0 %v22
  %v24 = vpop.xlane.xlu0 %23
  %v25 = vlog2.pop %v24
  %v26 = vmul.f32 %v25, 0.6931472
  %v27 = vadd.f32 %v26, %v19
  %v28 = vlaneseq
  %v29 = vand.u32 %v28, 127
  %30 = vset.pattern.permute.xlu0 0
  %31 = vperm.xlu0 %30, %v16
  %v32 = vpop.permute.xlu0 %31
  %vm33 = vcmp.eq.s32.totalorder %v29, %v32
  %v34 = vsel %vm33, %v15, 0.0
  %35 = vadd.xlane.f32.xlu0 %v34
  %v36 = vpop.xlane.xlu0 %35
  %v37 = vsub.f32 %v27, %v36
  %v38 = vmul.f32 %v37, %v17
  %vm39 = vcmask 7168
  %40 = vst.msk [vmem:[%s3] sm:$0xff] %vm39, %v38
  // Predicated region
  $region14: #{tpu_custom_call.1} parent=0 // pred_check
    _
  $region15: #{tpu_custom_call.1} parent=0 // pred_check_branch
    %42 = sbr.rel (0) target = $region17
  $region16: #{tpu_custom_call.1} parent=0 // pred_region
    _
  $region17: #{tpu_custom_call.1} parent=0 // pred_fallthru
    _
  // Predicated region
  $region18: #{tpu_custom_call.1} parent=0 // pred_check
    _
  $region19: #{tpu_custom_call.1} parent=0 // pred_check_branch
    %44 = sbr.rel (0) target = $region21
  $region20: #{tpu_custom_call.1} parent=0 // pred_region
    _
  $region21: #{tpu_custom_call.1} parent=0 // pred_fallthru
    _

</llo_original>
